<compile_context>
chip_gen: v7x
topology: tpu7x:2x2x1
jax: 0.10.0
libtpu: 0.0.40
codegen_flags: <defaults>
</compile_context>

<pallas_src>
import functools

import jax
import jax.numpy as jnp
from jax.experimental import pallas as pl
from jax.experimental.pallas import tpu as pltpu

# ----- synthetic BFM dimensions (small, deterministic) -----
N_VERT = 250      # deliberately NOT a multiple of 128: exercises lane padding
ID_DIM = 80
EX_DIM = 64
TEX_DIM = 80
COEFF_DIM = 257

# ----- kernel tiling knobs -----
MAX_TILE_N = 4096           # sweep 2048-4096 (v6e) / 4096-8192 bf16 (v7x) at real
                            # BFM scale; here it is capped by the tiny vertex count
BASIS_DTYPE = jnp.bfloat16  # streamed basis slab dtype (halves HBM traffic);
                            # lhs and accumulation stay f32
LANE_PAD = 256              # vertex-axis pad granularity (= 128 * max partials)

PER_COORD = ID_DIM + EX_DIM + 1          # id | ex | centered mean shape
BIG_K = 3 * PER_COORD + 1                # 436: x,y,z blocks + ones row (translation)


def _num_tensorcores():
    """2 on megacore parts (v7x / v5p / v4) so the 'parallel' vertex axis shards
    across TensorCores; 1 on single-TC parts (v5e / v6e) where it buys nothing."""
    try:
        kind = jax.devices()[0].device_kind.lower()
    except Exception:
        return 1
    for tag in ("v7", "v5p", "v4"):
        if tag in kind:
            return 2
    return 1


def make_bfm(key):
    """Deterministic synthetic stand-in for BFM('bfm/BFM/mSEmTFK68etc.chj')."""
    ks = jax.random.split(key, 5)
    mean_shape = jax.random.normal(ks[0], (N_VERT, 3), jnp.float32)
    id_base = 0.1 * jax.random.normal(ks[1], (N_VERT, 3, ID_DIM), jnp.float32)
    ex_base = 0.1 * jax.random.normal(ks[2], (N_VERT, 3, EX_DIM), jnp.float32)
    mean_tex = jax.random.normal(ks[3], (N_VERT, 3), jnp.float32)
    tex_base = 0.1 * jax.random.normal(ks[4], (N_VERT, 3, TEX_DIM), jnp.float32)
    triangle = (jnp.arange(N_VERT * 3, dtype=jnp.int32).reshape(N_VERT, 3)
                % N_VERT)
    return dict(mean_shape=mean_shape, id_base=id_base, ex_base=ex_base,
                mean_tex=mean_tex, tex_base=tex_base, triangle=triangle)


def split_coeff(c):
    return (c[:, :80], c[:, 80:144], c[:, 144:224],
            c[:, 224:227], c[:, 227:254], c[:, 254:257])


def rotation_from_angles(angles):
    """(B, 3) Euler angles -> (B, 3, 3) rotation, applied as v_row @ R."""
    x, y, z = angles[:, 0], angles[:, 1], angles[:, 2]
    cx, sx = jnp.cos(x), jnp.sin(x)
    cy, sy = jnp.cos(y), jnp.sin(y)
    cz, sz = jnp.cos(z), jnp.sin(z)
    zero = jnp.zeros_like(x)
    one = jnp.ones_like(x)
    rx = jnp.stack([one, zero, zero,
                    zero, cx, -sx,
                    zero, sx, cx], axis=-1).reshape(-1, 3, 3)
    ry = jnp.stack([cy, zero, sy,
                    zero, one, zero,
                    -sy, zero, cy], axis=-1).reshape(-1, 3, 3)
    rz = jnp.stack([cz, -sz, zero,
                    sz, cz, zero,
                    zero, zero, one], axis=-1).reshape(-1, 3, 3)
    rot = rz @ ry @ rx
    return jnp.transpose(rot, (0, 2, 1))   # row-vector convention


# --------------------- one-time basis preparation (not per call) ------------

def prepare_bfm_for_kernel(bfm, dtype=BASIS_DTYPE):
    """Build the (BIG_K, N_pad) basis slab once, outside the per-call path.

    Rows [k*PER_COORD : +ID_DIM]          id basis, coordinate k
         [... : +EX_DIM]                  expression basis, coordinate k
         [k*PER_COORD + PER_COORD - 1]    vertex-mean-centered mean shape, coord k
         [BIG_K - 1]                      ones (carries the per-batch translation)

    The vertex (lane) axis is zero-padded to a multiple of LANE_PAD so any real
    vertex count tiles cleanly; padded columns produce exactly 0 contribution.
    """
    idb = jnp.transpose(bfm["id_base"], (1, 2, 0))     # (3, ID_DIM, N)
    exb = jnp.transpose(bfm["ex_base"], (1, 2, 0))     # (3, EX_DIM, N)
    mean_c = bfm["mean_shape"] - bfm["mean_shape"].mean(0, keepdims=True)
    mean_t = jnp.transpose(mean_c, (1, 0))             # (3, N)
    per_coord = [jnp.concatenate([idb[c], exb[c], mean_t[c][None]], axis=0)
                 for c in range(3)]                    # each (PER_COORD, N)
    n = bfm["mean_shape"].shape[0]
    big = jnp.concatenate(per_coord + [jnp.ones((1, n), jnp.float32)], axis=0)
    n_pad = ((n + LANE_PAD - 1) // LANE_PAD) * LANE_PAD
    big = jnp.pad(big, ((0, 0), (0, n_pad - n)))       # zero columns -> zero loss
    return big.astype(dtype)                           # (BIG_K, n_pad)


def _fold_coeffs(coeff, half):
    """(B, 257) -> (half, BIG_K) f32: rotation/translation-folded coefficient rows.

    Row c*B+b, column k*PER_COORD+j holds rot[b, k, c] * coeff145[b, j]; the
    last column holds translation t[b, c].  Rows [3B:half) are zero padding.
    """
    B = coeff.shape[0]
    idc, exc, _tex, ang, _gamma, tr = split_coeff(coeff)
    rot = rotation_from_angles(ang)                                 # (B, 3, 3)
    c_one = jnp.concatenate([idc, exc, jnp.ones((B, 1), coeff.dtype)], axis=1)
    lw = jnp.einsum("bkc,bj->cbkj", rot, c_one)                     # (3, B, 3, PER_COORD)
    lw = lw.reshape(3 * B, 3 * PER_COORD)
    t_col = jnp.transpose(tr, (1, 0)).reshape(3 * B, 1)             # row c*B+b -> t[b, c]
    rows = jnp.concatenate([lw, t_col], axis=1)                     # (3B, BIG_K)
    return jnp.pad(rows, ((0, half - 3 * B), (0, 0))).astype(jnp.float32)


def _pick_tile_n(per_partial, max_tile=MAX_TILE_N):
    """Largest 128-multiple divisor of per_partial, capped at max_tile."""
    best = 128
    for t in range(128, min(max_tile, per_partial) + 1, 128):
        if per_partial % t == 0:
            best = t
    return best


# --------------------------- Pallas kernel ---------------------------------

def _vdc_kernel(lhs_ref, base_ref, out_ref, acc_ref, *, inv_denom):
    i = pl.program_id(1)

    @pl.when(i == 0)
    def _():
        acc_ref[...] = jnp.zeros_like(acc_ref)

    # Single thin MXU dot per vertex tile: rotation, translation, mean shape AND
    # the input-target difference are all folded into the lhs coefficient rows.
    d = jnp.dot(lhs_ref[...], base_ref[...].astype(jnp.float32),
                preferred_element_type=jnp.float32)       # (half, TILE_N) = v_gt - v_in
    acc_ref[...] += d * d                                 # f32 vector accumulator

    @pl.when(i == pl.num_programs(1) - 1)
    def _():
        # One cross-lane reduction per partial, written to this partial's own
        # output element (no shared accumulator under the parallel axis).
        total = jnp.sum(acc_ref[...])
        out_ref[...] = (total * inv_denom) * jnp.ones((1, 1, 1), jnp.float32)


def vdc_loss_pallas(inp, tgt, basis, *, n_vert):
    """basis: output of prepare_bfm_for_kernel (precomputed once).
    n_vert: TRUE (unpadded) vertex count, used for the mean denominator."""
    B = inp.shape[0]
    n_pad = basis.shape[1]
    half = ((3 * B + 7) // 8) * 8                         # sublane-aligned row count

    # Difference folded into a single half-sized lhs (f32; only the basis is bf16).
    lhs_diff = _fold_coeffs(tgt, half) - _fold_coeffs(inp, half)   # (half, BIG_K)

    num_partials = _num_tensorcores()
    assert n_pad % (num_partials * 128) == 0, (n_pad, num_partials)
    per_partial = n_pad // num_partials
    tile_n = _pick_tile_n(per_partial)
    tiles_per_partial = per_partial // tile_n

    inv_denom = 1.0 / float(B * n_vert * 3)
    kernel = functools.partial(_vdc_kernel, inv_denom=inv_denom)

    # VMEM budget: double-buffered basis tile + resident lhs + f32 accumulator.
    basis_itemsize = jnp.dtype(basis.dtype).itemsize
    est = (2 * BIG_K * tile_n * basis_itemsize
           + half * BIG_K * 4
           + half * tile_n * 4
           + (2 << 20))
    vmem_limit = int(min(max(2 * est, 32 * 1024 * 1024), 56 * 1024 * 1024))

    partials = pl.pallas_call(
        kernel,
        out_shape=jax.ShapeDtypeStruct((num_partials, 1, 1), jnp.float32),
        grid_spec=pltpu.PrefetchScalarGridSpec(
            num_scalar_prefetch=0,
            grid=(num_partials, tiles_per_partial),
            in_specs=[
                # folded coefficient-difference rows: tiny, grid-invariant, resident
                pl.BlockSpec((half, BIG_K), lambda p, i: (0, 0)),
                # basis slab, streamed tile-by-tile along the vertex (lane) axis;
                # default 2-deep buffering (deeper buys nothing: DMA-bound).
                pl.BlockSpec((BIG_K, tile_n),
                             lambda p, i: (0, p * tiles_per_partial + i)),
            ],
            out_specs=pl.BlockSpec((1, 1, 1), lambda p, i: (p, 0, 0)),
            scratch_shapes=[pltpu.VMEM((half, tile_n), jnp.float32)],
        ),
        compiler_params=pltpu.CompilerParams(
            dimension_semantics=("parallel", "arbitrary"),
            vmem_limit_bytes=vmem_limit),
        # Default MXU precision: the difference-folding removed the cancellation
        # between two large reconstructions, so default precision is fine; raise
        # precision on the dot if tighter agreement with f32 is ever needed.
    )(lhs_diff, basis)

    return partials.sum()


# ----------------------------- pure-JAX reference ---------------------------

def vdc_loss_ref(inp, tgt, bfm):
    def recon(coeff):
        idc, exc, _tex, ang, _gamma, tr = split_coeff(coeff)
        shape = (jnp.einsum("bi,nci->bnc", idc, bfm["id_base"])
                 + jnp.einsum("bi,nci->bnc", exc, bfm["ex_base"])
                 + bfm["mean_shape"][None])
        shape = shape - bfm["mean_shape"].mean(0)[None, None]
        rot = rotation_from_angles(ang)
        return jnp.einsum("bnk,bkc->bnc", shape, rot) + tr[:, None, :]

    v_i = recon(inp)
    v_g = recon(tgt)
    return jnp.mean((v_g - v_i) ** 2)


if __name__ == "__main__":
    key = jax.random.PRNGKey(0)
    k_bfm, k_in, k_tg = jax.random.split(key, 3)

    bfm = make_bfm(k_bfm)
    # One-time basis layout prep (transpose / centering / concat / pad), NOT per call.
    basis = jax.block_until_ready(prepare_bfm_for_kernel(bfm))

    B = 2
    x = jax.random.normal(k_in, (B, COEFF_DIM), jnp.float32)
    y = jax.random.normal(k_tg, (B, COEFF_DIM), jnp.float32)

    loss_fn = jax.jit(vdc_loss_pallas, static_argnames=("n_vert",))
    loss = jax.block_until_ready(loss_fn(x, y, basis, n_vert=N_VERT))

    ref = jax.block_until_ready(vdc_loss_ref(x, y, bfm))
    # tolerance dominated by the bf16 basis slab (streaming-bandwidth trade-off)
    assert jnp.allclose(loss, ref, rtol=3e-2, atol=1e-4), (loss, ref)

    print("KERNEL_OK")
</pallas_src>

<mosaic_0001>
module attributes {stable_mosaic.version = 11 : i64} {
  func.func @_vdc_kernel(%arg0: i32, %arg1: i32, %arg2: memref<8x436xf32, #tpu.memory_space<vmem>>, %arg3: memref<436x256xbf16, #tpu.memory_space<vmem>>, %arg4: memref<1x1x1xf32, #tpu.memory_space<vmem>>, %arg5: memref<8x256xf32, #tpu.memory_space<vmem>>) attributes {dimension_semantics = [#tpu.dimension_semantics<parallel>, #tpu.dimension_semantics<arbitrary>], iteration_bounds = array<i64: 1, 1>, scalar_prefetch = 0 : i64, scratch_operands = 1 : i64, tpu.core_type = #tpu.core_type<tc>, window_params = [{pipeline_mode = #tpu.pipeline_mode<synchronous>, transform_indices = @transform_0, window_bounds = array<i64: 8, 436>}, {transform_indices = @transform_1, window_bounds = array<i64: 436, 256>}, {transform_indices = @transform_2, window_bounds = array<i64: 1, 1, 1>}]} {
    %c0_i32 = arith.constant 0 : i32
    %0 = arith.cmpi eq, %arg1, %c0_i32 : i32
    %1 = arith.extui %0 : i1 to i32
    %c0_i32_0 = arith.constant 0 : i32
    %2 = arith.cmpi ne, %1, %c0_i32_0 : i32
    scf.if %2 {
      %cst_10 = arith.constant 0.000000e+00 : f32
      %14 = vector.broadcast %cst_10 : f32 to vector<8x256xf32>
      %c0_11 = arith.constant 0 : index
      %c0_12 = arith.constant 0 : index
      %15 = vector.load %arg5[%c0_11, %c0_12] : memref<8x256xf32, #tpu.memory_space<vmem>>, vector<8x256xf32>
      tpu.vector_store %arg5[%c0_11, %c0_12], %14 {strides = array<i32>} : memref<8x256xf32, #tpu.memory_space<vmem>>, vector<8x256xf32>,
    } else {
    }
    %c0 = arith.constant 0 : index
    %c0_1 = arith.constant 0 : index
    %3 = vector.load %arg2[%c0, %c0_1] : memref<8x436xf32, #tpu.memory_space<vmem>>, vector<8x436xf32>
    %c0_2 = arith.constant 0 : index
    %c0_3 = arith.constant 0 : index
    %4 = vector.load %arg3[%c0_2, %c0_3] : memref<436x256xbf16, #tpu.memory_space<vmem>>, vector<436x256xbf16>
    %5 = arith.extf %4 : vector<436x256xbf16> to vector<436x256xf32>
    %cst = arith.constant dense<0.000000e+00> : vector<8x256xf32>
    %6 = tpu.matmul %3, %5, %cst {dimension_numbers = #tpu.dot_dimension_numbers<[1], [0], [0], [1], [0, 0, 1, 1], [], []>} : vector<8x436xf32>, vector<436x256xf32>, vector<8x256xf32> -> vector<8x256xf32>
    %c0_4 = arith.constant 0 : index
    %c0_5 = arith.constant 0 : index
    %7 = vector.load %arg5[%c0_4, %c0_5] : memref<8x256xf32, #tpu.memory_space<vmem>>, vector<8x256xf32>
    %8 = arith.mulf %6, %6 : vector<8x256xf32>
    %9 = arith.addf %7, %8 : vector<8x256xf32>
    %c0_6 = arith.constant 0 : index
    %c0_7 = arith.constant 0 : index
    %10 = vector.load %arg5[%c0_6, %c0_7] : memref<8x256xf32, #tpu.memory_space<vmem>>, vector<8x256xf32>
    tpu.vector_store %arg5[%c0_6, %c0_7], %9 {strides = array<i32>} : memref<8x256xf32, #tpu.memory_space<vmem>>, vector<8x256xf32>,
    %c0_i32_8 = arith.constant 0 : i32
    %11 = arith.cmpi eq, %arg1, %c0_i32_8 : i32
    %12 = arith.extui %11 : i1 to i32
    %c0_i32_9 = arith.constant 0 : i32
    %13 = arith.cmpi ne, %12, %c0_i32_9 : i32
    scf.if %13 {
      %c0_10 = arith.constant 0 : index
      %c0_11 = arith.constant 0 : index
      %14 = vector.load %arg5[%c0_10, %c0_11] : memref<8x256xf32, #tpu.memory_space<vmem>>, vector<8x256xf32>
      %15 = vector.shape_cast %14 : vector<8x256xf32> to vector<1x8x256xf32>
      %cst_12 = arith.constant dense<0.000000e+00> : vector<1xf32>
      %16 = vector.multi_reduction <add>, %15, %cst_12 [1, 2] : vector<1x8x256xf32> to vector<1xf32>
      %17 = vector.shape_cast %16 : vector<1xf32> to vector<1x1x1xf32>
      %18 = vector.extract %17[0, 0, 0] : f32 from vector<1x1x1xf32>
      %cst_13 = arith.constant 6.66666659E-4 : f32
      %19 = arith.mulf %18, %cst_13 : f32
      %cst_14 = arith.constant 1.000000e+00 : f32
      %20 = vector.broadcast %cst_14 : f32 to vector<1x1x1xf32>
      %21 = vector.broadcast %19 : f32 to vector<1x1x1xf32>
      %22 = arith.mulf %21, %20 : vector<1x1x1xf32>
      %c0_15 = arith.constant 0 : index
      %c0_16 = arith.constant 0 : index
      %c0_17 = arith.constant 0 : index
      %23 = vector.load %arg4[%c0_15, %c0_16, %c0_17] : memref<1x1x1xf32, #tpu.memory_space<vmem>>, vector<1x1x1xf32>
      tpu.vector_store %arg4[%c0_15, %c0_16, %c0_17], %22 {strides = array<i32>} : memref<1x1x1xf32, #tpu.memory_space<vmem>>, vector<1x1x1xf32>,
    } else {
    }
    return
  }
  func.func @transform_0(%arg0: i32, %arg1: i32) -> (i32, i32) {
    %c0_i32 = arith.constant 0 : i32
    %c0_i32_0 = arith.constant 0 : i32
    %c0_i32_1 = arith.constant 0 : i32
    return %c0_i32, %c0_i32_0 : i32, i32
  }
  func.func @transform_1(%arg0: i32, %arg1: i32) -> (i32, i32) {
    %c1_i32 = arith.constant 1 : i32
    %0 = arith.muli %arg0, %c1_i32 : i32
    %1 = arith.addi %0, %arg1 : i32
    %c0_i32 = arith.constant 0 : i32
    %c0_i32_0 = arith.constant 0 : i32
    return %c0_i32, %1 : i32, i32
  }
  func.func @transform_2(%arg0: i32, %arg1: i32) -> (i32, i32, i32) {
    %c0_i32 = arith.constant 0 : i32
    %c0_i32_0 = arith.constant 0 : i32
    %c0_i32_1 = arith.constant 0 : i32
    return %arg0, %c0_i32, %c0_i32_0 : i32, i32, i32
  }
}

</mosaic_0001>

<llo_original>
// kernel: vdc_loss_pallas.1
$region0: #{vdc_loss_pallas.1}
  #allocation0 [shape = 'u32[]', space=smem, size = 0x4, offset = 0x4, fixed_abs, tag = 'smem constant byte address 0x4 - core index']
  #allocation1 [shape = 'u32[144,128]{1,0:T(1,128)}', space=vmem, size = 0x12000, scoped, tag = 'internal scratch']
  #allocation2 [shape = 'f32[8,256]{1,0:T(8,128)}', space=vmem, size = 0x2000, scoped, tag = 'scratch operand']
  %s0 = inlined_call_operand.vmem [shape: f32[8,436], index: 0, kind: input, shape index: {}]
  %s1 = inlined_call_operand.vmem [shape: bf16[436,256], index: 1, kind: input, shape index: {}]
  %s2 = inlined_call_operand.hbm [shape: f32[1,1,1], index: 2, kind: output, shape index: {}]
  %s3 = sld [smem:[#allocation0]]
  $region26: #{vdc_loss_pallas.1} parent=0
    _
  %s5 = ssub.s32 1, %s3
  %s6 = scalar_select 0, %s5, %s3
  $region1: #{vdc_loss_pallas.1} parent=0
    #allocation3 [shape = 'u8[512]{0}', space=vmem, size = 0x400, scoped, tag = 'output window, operand 0, single buffered']
    #allocation4 [shape = 's32[1]{0}', space=sflag, size = 0x4, scoped, tag = 'scoped memory for vdc_loss_pallas.1']
    %7 = vsyncpa [#allocation4], 0
    // Predicated region
    $region2: #{vdc_loss_pallas.1} parent=1 // pred_check
      _
    $region3: #{vdc_loss_pallas.1} parent=1 // pred_check_branch
      %9 = sbr.rel (0) target = $region5
    $region4: #{vdc_loss_pallas.1} parent=1 // pred_region
      _
    $region5: #{vdc_loss_pallas.1} parent=1 // pred_fallthru
      _
    // Predicated region
    $region6: #{vdc_loss_pallas.1} parent=1 // pred_check
      _
    $region7: #{vdc_loss_pallas.1} parent=1 // pred_check_branch
      %11 = sbr.rel (0) target = $region9
    $region8: #{vdc_loss_pallas.1} parent=1 // pred_region
      %s12 = sadd.s32 0, 0
      %s13 = smul.u32 2, %s12
      %p14 = scmp.lt.s32.totalorder %s13, 1
      %s15 = scalar_select %p14, %s13, 1
      %s16 = smul.addr %s15, 4
      %s17 = scalar_lea.vmem %s1, %s16
      %s18 = sadd.s32 0, 0
      %s19 = smul.u32 2, %s18
    $region9: #{vdc_loss_pallas.1} parent=1 // pred_fallthru
      _
    %s20 = sadd.s32 0, 0
    %s21 = smul.u32 2, %s20
    %p22 = scmp.lt.s32.totalorder %s21, 1
    %s23 = scalar_select %p22, %s21, 1
    %s24 = smul.addr %s23, 4
    %s25 = scalar_lea.vmem %s1, %s24
    %s26 = sadd.s32 0, 0
    %s27 = smul.u32 2, %s26
    %p28 = scmp.lt.s32.totalorder %s27, 1
    %s29 = scalar_select %p28, %s27, 1
    %s30 = smul.addr %s29, 4
    %s31 = scalar_lea.vmem %s1, %s30
    %s32 = sadd.s32 0, 0
    %s33 = smul.u32 2, %s32
    %p34 = scmp.eq.s32.totalorder 0, 0
    // Predicated region
    $region10: #{vdc_loss_pallas.1} parent=1 // pred_check
      %p35 = pneg %p34
    $region11: #{vdc_loss_pallas.1} parent=1 // pred_check_branch
      %37 = sbr.rel (%p35) target = $region13
    $region12: #{vdc_loss_pallas.1} parent=1 // pred_region
      %38 = vst [vmem:[#allocation2] sm:$0xff] 0.0
      %39 = vst [vmem:[#allocation2 + $0x8] sm:$0xff] 0.0
    $region13: #{vdc_loss_pallas.1} parent=1 // pred_fallthru
      _
    %v40 = vld [vmem:[%s0] sm:$0xff]
    %v41 = vld [vmem:[%s0 + $0x8] sm:$0xff]
    %v42 = vld [vmem:[%s0 + $0x10] sm:$0xff]
    %v43 = vld [vmem:[%s0 + $0x18] sm:$0xff]
    %v44 = vld [vmem:[%s31] sm:$0xff]
    %v45 = vld [vmem:[%s31 + $0x8] sm:$0xff]
    %v46 = vld [vmem:[%s31 + $0x10] sm:$0xff]
    %v47 = vld [vmem:[%s31 + $0x18] sm:$0xff]
    %v48 = vld [vmem:[%s31 + $0x20] sm:$0xff]
    %v49 = vld [vmem:[%s31 + $0x28] sm:$0xff]
    %v50 = vld [vmem:[%s31 + $0x30] sm:$0xff]
    %v51 = vld [vmem:[%s31 + $0x38] sm:$0xff]
    %v52 = vld [vmem:[%s31 + $0x40] sm:$0xff]
    %v53 = vld [vmem:[%s31 + $0x48] sm:$0xff]
    %v54 = vld [vmem:[%s31 + $0x50] sm:$0xff]
    %v55 = vld [vmem:[%s31 + $0x58] sm:$0xff]
    %v56 = vld [vmem:[%s31 + $0x60] sm:$0xff]
    %v57 = vld [vmem:[%s31 + $0x68] sm:$0xff]
    %v58 = vld [vmem:[%s31 + $0x70] sm:$0xff]
    %v59 = vld [vmem:[%s31 + $0x78] sm:$0xff]
    %v60 = vld [vmem:[%s31 + $0x80] sm:$0xff]
    %v61 = vld [vmem:[%s31 + $0x88] sm:$0xff]
    %v62 = vld [vmem:[%s31 + $0x90] sm:$0xff]
    %v63 = vld [vmem:[%s31 + $0x98] sm:$0xff]
    %v64 = vld [vmem:[%s31 + $0xa0] sm:$0xff]
    %v65 = vld [vmem:[%s31 + $0xa8] sm:$0xff]
    %v66 = vld [vmem:[%s31 + $0xb0] sm:$0xff]
    %v67 = vld [vmem:[%s31 + $0xb8] sm:$0xff]
    %v68 = vld [vmem:[%s31 + $0xc0] sm:$0xff]
    %v69 = vld [vmem:[%s31 + $0xc8] sm:$0xff]
    %v70 = vld [vmem:[%s31 + $0xd0] sm:$0xff]
    %v71 = vld [vmem:[%s31 + $0xd8] sm:$0xff]
    %v72 = vld [vmem:[%s31 + $0xe0] sm:$0xff]
    %v73 = vld [vmem:[%s31 + $0xe8] sm:$0xff]
    %v74 = vld [vmem:[%s31 + $0xf0] sm:$0xff]
    %v75 = vld [vmem:[%s31 + $0xf8] sm:$0xff]
    %v76 = vld [vmem:[%s31 + $0x100] sm:$0xff]
    %v77 = vld [vmem:[%s31 + $0x108] sm:$0xff]
    %v78 = vld [vmem:[%s31 + $0x110] sm:$0xff]
    %v79 = vld [vmem:[%s31 + $0x118] sm:$0xff]
    %v80 = vld [vmem:[%s31 + $0x120] sm:$0xff]
    %v81 = vld [vmem:[%s31 + $0x128] sm:$0xff]
    %v82 = vld [vmem:[%s31 + $0x130] sm:$0xff]
    %v83 = vld [vmem:[%s31 + $0x138] sm:$0xff]
    %v84 = vld [vmem:[%s31 + $0x140] sm:$0xff]
    %v85 = vld [vmem:[%s31 + $0x148] sm:$0xff]
    %v86 = vld [vmem:[%s31 + $0x150] sm:$0xff]
    %v87 = vld [vmem:[%s31 + $0x158] sm:$0xff]
    %v88 = vld [vmem:[%s31 + $0x160] sm:$0xff]
    %v89 = vld [vmem:[%s31 + $0x168] sm:$0xff]
    %v90 = vld [vmem:[%s31 + $0x170] sm:$0xff]
    %v91 = vld [vmem:[%s31 + $0x178] sm:$0xff]
    %v92 = vld [vmem:[%s31 + $0x180] sm:$0xff]
    %v93 = vld [vmem:[%s31 + $0x188] sm:$0xff]
    %v94 = vld [vmem:[%s31 + $0x190] sm:$0xff]
    %v95 = vld [vmem:[%s31 + $0x198] sm:$0xff]
    %v96 = vld [vmem:[%s31 + $0x1a0] sm:$0xff]
    %v97 = vld [vmem:[%s31 + $0x1a8] sm:$0xff]
    %v98 = vld [vmem:[%s31 + $0x1b0] sm:$0x33]
    %v99 = vunpack.c.l.bf16 %v44
    %v100 = vunpack.c.h.bf16 %v44
    %v101 = vunpack.c.l.bf16 %v45
    %v102 = vunpack.c.h.bf16 %v45
    %v103 = vunpack.c.l.bf16 %v46
    %v104 = vunpack.c.h.bf16 %v46
    %v105 = vunpack.c.l.bf16 %v47
    %v106 = vunpack.c.h.bf16 %v47
    %v107 = vunpack.c.l.bf16 %v48
    %v108 = vunpack.c.h.bf16 %v48
    %v109 = vunpack.c.l.bf16 %v49
    %v110 = vunpack.c.h.bf16 %v49
    %v111 = vunpack.c.l.bf16 %v50
    %v112 = vunpack.c.h.bf16 %v50
    %v113 = vunpack.c.l.bf16 %v51
    %v114 = vunpack.c.h.bf16 %v51
    %v115 = vunpack.c.l.bf16 %v52
    %v116 = vunpack.c.h.bf16 %v52
    %v117 = vunpack.c.l.bf16 %v53
    %v118 = vunpack.c.h.bf16 %v53
    %v119 = vunpack.c.l.bf16 %v54
    %v120 = vunpack.c.h.bf16 %v54
    %v121 = vunpack.c.l.bf16 %v55
    %v122 = vunpack.c.h.bf16 %v55
    %v123 = vunpack.c.l.bf16 %v56
    %v124 = vunpack.c.h.bf16 %v56
    %v125 = vunpack.c.l.bf16 %v57
    %v126 = vunpack.c.h.bf16 %v57
    %v127 = vunpack.c.l.bf16 %v58
    %v128 = vunpack.c.h.bf16 %v58
    %v129 = vunpack.c.l.bf16 %v59
    %v130 = vunpack.c.h.bf16 %v59
    %v131 = vunpack.c.l.bf16 %v60
    %v132 = vunpack.c.h.bf16 %v60
    %v133 = vunpack.c.l.bf16 %v61
    %v134 = vunpack.c.h.bf16 %v61
    %v135 = vunpack.c.l.bf16 %v62
    %v136 = vunpack.c.h.bf16 %v62
    %v137 = vunpack.c.l.bf16 %v63
    %v138 = vunpack.c.h.bf16 %v63
    %v139 = vunpack.c.l.bf16 %v64
    %v140 = vunpack.c.h.bf16 %v64
    %v141 = vunpack.c.l.bf16 %v65
    %v142 = vunpack.c.h.bf16 %v65
    %v143 = vunpack.c.l.bf16 %v66
    %v144 = vunpack.c.h.bf16 %v66
    %v145 = vunpack.c.l.bf16 %v67
    %v146 = vunpack.c.h.bf16 %v67
    %v147 = vunpack.c.l.bf16 %v68
    %v148 = vunpack.c.h.bf16 %v68
    %v149 = vunpack.c.l.bf16 %v69
    %v150 = vunpack.c.h.bf16 %v69
    %v151 = vunpack.c.l.bf16 %v70
    %v152 = vunpack.c.h.bf16 %v70
    %v153 = vunpack.c.l.bf16 %v71
    %v154 = vunpack.c.h.bf16 %v71
    %v155 = vunpack.c.l.bf16 %v72
    %v156 = vunpack.c.h.bf16 %v72
    %v157 = vunpack.c.l.bf16 %v73
    %v158 = vunpack.c.h.bf16 %v73
    %v159 = vunpack.c.l.bf16 %v74
    %v160 = vunpack.c.h.bf16 %v74
    %v161 = vunpack.c.l.bf16 %v75
    %v162 = vunpack.c.h.bf16 %v75
    %v163 = vunpack.c.l.bf16 %v76
    %v164 = vunpack.c.h.bf16 %v76
    %v165 = vunpack.c.l.bf16 %v77
    %v166 = vunpack.c.h.bf16 %v77
    %v167 = vunpack.c.l.bf16 %v78
    %v168 = vunpack.c.h.bf16 %v78
    %v169 = vunpack.c.l.bf16 %v79
    %v170 = vunpack.c.h.bf16 %v79
    %v171 = vunpack.c.l.bf16 %v80
    %v172 = vunpack.c.h.bf16 %v80
    %v173 = vunpack.c.l.bf16 %v81
    %v174 = vunpack.c.h.bf16 %v81
    %v175 = vunpack.c.l.bf16 %v82
    %v176 = vunpack.c.h.bf16 %v82
    %v177 = vunpack.c.l.bf16 %v83
    %v178 = vunpack.c.h.bf16 %v83
    %v179 = vunpack.c.l.bf16 %v84
    %v180 = vunpack.c.h.bf16 %v84
    %v181 = vunpack.c.l.bf16 %v85
    %v182 = vunpack.c.h.bf16 %v85
    %v183 = vunpack.c.l.bf16 %v86
    %v184 = vunpack.c.h.bf16 %v86
    %v185 = vunpack.c.l.bf16 %v87
    %v186 = vunpack.c.h.bf16 %v87
    %v187 = vunpack.c.l.bf16 %v88
    %v188 = vunpack.c.h.bf16 %v88
    %v189 = vunpack.c.l.bf16 %v89
    %v190 = vunpack.c.h.bf16 %v89
    %v191 = vunpack.c.l.bf16 %v90
    %v192 = vunpack.c.h.bf16 %v90
    %v193 = vunpack.c.l.bf16 %v91
    %v194 = vunpack.c.h.bf16 %v91
    %v195 = vunpack.c.l.bf16 %v92
    %v196 = vunpack.c.h.bf16 %v92
    %v197 = vunpack.c.l.bf16 %v93
    %v198 = vunpack.c.h.bf16 %v93
    %v199 = vunpack.c.l.bf16 %v94
    %v200 = vunpack.c.h.bf16 %v94
    %v201 = vunpack.c.l.bf16 %v95
    %v202 = vunpack.c.h.bf16 %v95
    %v203 = vunpack.c.l.bf16 %v96
    %v204 = vunpack.c.h.bf16 %v96
    %v205 = vunpack.c.l.bf16 %v97
    %v206 = vunpack.c.h.bf16 %v97
    %v207 = vunpack.c.l.bf16 %v98
    %v208 = vunpack.c.h.bf16 %v98
    %vm209 = vcmask 424960
    %v211 = vsel %vm209, %v43, 0
    %vm213 = vcmask 1043456
    %v215 = vsel %vm213, %v207, 0
    %v218 = vsel %vm213, %v208, 0
    %220 = vmatprep.subr.mxu0 %v100
    %221 = vmatpush1.msra.mxu0 %v99
    %222 = vmatprep.subr.mxu0 %v102
    %223 = vmatpush1.msra.mxu0 %v101
    %224 = vmatprep.subr.mxu0 %v104
    %225 = vmatpush1.msra.mxu0 %v103
    %226 = vmatprep.subr.mxu0 %v106
    %227 = vmatpush1.msra.mxu0 %v105
    %228 = vmatprep.subr.mxu0 %v108
    %229 = vmatpush1.msra.mxu0 %v107
    %230 = vmatprep.subr.mxu0 %v110
    %231 = vmatpush1.msra.mxu0 %v109
    %232 = vmatprep.subr.mxu0 %v112
    %233 = vmatpush1.msra.mxu0 %v111
    %234 = vmatprep.subr.mxu0 %v114
    %235 = vmatpush1.msra.mxu0 %v113
    %236 = vmatprep.subr.mxu0 %v116
    %237 = vmatpush1.msra.mxu0 %v115
    %238 = vmatprep.subr.mxu0 %v118
    %239 = vmatpush1.msra.mxu0 %v117
    %240 = vmatprep.subr.mxu0 %v120
    %241 = vmatpush1.msra.mxu0 %v119
    %242 = vmatprep.subr.mxu0 %v122
    %243 = vmatpush1.msra.mxu0 %v121
    %244 = vmatprep.subr.mxu0 %v124
    %245 = vmatpush1.msra.mxu0 %v123
    %246 = vmatprep.subr.mxu0 %v126
    %247 = vmatpush1.msra.mxu0 %v125
    %248 = vmatprep.subr.mxu0 %v128
    %249 = vmatpush1.msra.mxu0 %v127
    %250 = vmatprep.subr.mxu0 %v130
    %251 = vmatpush1.msra.mxu0 %v129
    %252 = vmatprep.subr.mxu0 %v132
    %253 = vmatpush1.msra.mxu0 %v131
    %254 = vmatprep.subr.mxu0 %v134
    %255 = vmatpush1.msra.mxu0 %v133
    %256 = vmatprep.subr.mxu0 %v136
    %257 = vmatpush1.msra.mxu0 %v135
    %258 = vmatprep.subr.mxu0 %v138
    %259 = vmatpush1.msra.mxu0 %v137
    %260 = vmatprep.subr.mxu0 %v140
    %261 = vmatpush1.msra.mxu0 %v139
    %262 = vmatprep.subr.mxu0 %v142
    %263 = vmatpush1.msra.mxu0 %v141
    %264 = vmatprep.subr.mxu0 %v144
    %265 = vmatpush1.msra.mxu0 %v143
    %266 = vmatprep.subr.mxu0 %v146
    %267 = vmatpush1.msra.mxu0 %v145
    %268 = vmatprep.subr.mxu0 %v148
    %269 = vmatpush1.msra.mxu0 %v147
    %270 = vmatprep.subr.mxu0 %v150
    %271 = vmatpush1.msra.mxu0 %v149
    %272 = vmatprep.subr.mxu0 %v152
    %273 = vmatpush1.msra.mxu0 %v151
    %274 = vmatprep.subr.mxu0 %v154
    %275 = vmatpush1.msra.mxu0 %v153
    %276 = vmatprep.subr.mxu0 %v156
    %277 = vmatpush1.msra.mxu0 %v155
    %278 = vmatprep.subr.mxu0 %v158
    %279 = vmatpush1.msra.mxu0 %v157
    %280 = vmatprep.subr.mxu0 %v160
    %281 = vmatpush1.msra.mxu0 %v159
    %282 = vmatprep.subr.mxu0 %v162
    %283 = vmatpush1.msra.mxu0 %v161
    %284 = vmatprep.mubr.f32.mxu0 %v41
    %285 = vmatmul.mubr.f32.gmra.mrb[0].mxu0 %v40
    %v286 = vpop.f32.mrb[0].mxu0
    %v287 = vadd.f32 0.0, %v286
    %v288 = vpop.f32.mrb[0].mxu0
    %v289 = vadd.f32 0.0, %v288
    %290 = vdwg.mxu0
    %291 = vmatprep.subr.mxu0 %v164
    %292 = vmatpush1.msra.mxu0 %v163
    %293 = vmatprep.subr.mxu0 %v166
    %294 = vmatpush1.msra.mxu0 %v165
    %295 = vmatprep.subr.mxu0 %v168
    %296 = vmatpush1.msra.mxu0 %v167
    %297 = vmatprep.subr.mxu0 %v170
    %298 = vmatpush1.msra.mxu0 %v169
    %299 = vmatprep.subr.mxu0 %v172
    %300 = vmatpush1.msra.mxu0 %v171
    %301 = vmatprep.subr.mxu0 %v174
    %302 = vmatpush1.msra.mxu0 %v173
    %303 = vmatprep.subr.mxu0 %v176
    %304 = vmatpush1.msra.mxu0 %v175
    %305 = vmatprep.subr.mxu0 %v178
    %306 = vmatpush1.msra.mxu0 %v177
    %307 = vmatprep.subr.mxu0 %v180
    %308 = vmatpush1.msra.mxu0 %v179
    %309 = vmatprep.subr.mxu0 %v182
    %310 = vmatpush1.msra.mxu0 %v181
    %311 = vmatprep.subr.mxu0 %v184
    %312 = vmatpush1.msra.mxu0 %v183
    %313 = vmatprep.subr.mxu0 %v186
    %314 = vmatpush1.msra.mxu0 %v185
    %315 = vmatprep.subr.mxu0 %v188
    %316 = vmatpush1.msra.mxu0 %v187
    %317 = vmatprep.subr.mxu0 %v190
    %318 = vmatpush1.msra.mxu0 %v189
    %319 = vmatprep.subr.mxu0 %v192
    %320 = vmatpush1.msra.mxu0 %v191
    %321 = vmatprep.subr.mxu0 %v194
    %322 = vmatpush1.msra.mxu0 %v193
    %323 = vmatprep.subr.mxu0 %v196
    %324 = vmatpush1.msra.mxu0 %v195
    %325 = vmatprep.subr.mxu0 %v198
    %326 = vmatpush1.msra.mxu0 %v197
    %327 = vmatprep.subr.mxu0 %v200
    %328 = vmatpush1.msra.mxu0 %v199
    %329 = vmatprep.subr.mxu0 %v202
    %330 = vmatpush1.msra.mxu0 %v201
    %331 = vmatprep.subr.mxu0 %v204
    %332 = vmatpush1.msra.mxu0 %v203
    %333 = vmatprep.subr.mxu0 %v206
    %334 = vmatpush1.msra.mxu0 %v205
    %335 = vmatprep.subr.mxu0 %v218
    %336 = vmatpush1.msra.mxu0 %v215
    %337 = vmatprep.subr.mxu0 0.0
    %338 = vmatpush1.msra.mxu0 0.0
    %339 = vmatprep.subr.mxu0 0.0
    %340 = vmatpush1.msra.mxu0 0.0
    %341 = vmatprep.subr.mxu0 0.0
    %342 = vmatpush1.msra.mxu0 0.0
    %343 = vmatprep.subr.mxu0 0.0
    %344 = vmatpush1.msra.mxu0 0.0
    %345 = vmatprep.subr.mxu0 0.0
    %346 = vmatpush1.msra.mxu0 0.0
    %347 = vmatprep.subr.mxu0 0.0
    %348 = vmatpush1.msra.mxu0 0.0
    %349 = vmatprep.subr.mxu0 0.0
    %350 = vmatpush1.msra.mxu0 0.0
    %351 = vmatprep.subr.mxu0 0.0
    %352 = vmatpush1.msra.mxu0 0.0
    %353 = vmatprep.subr.mxu0 0.0
    %354 = vmatpush1.msra.mxu0 0.0
    %355 = vmatprep.mubr.f32.mxu0 %v211
    %356 = vmatmul.mubr.f32.gmra.mrb[0].mxu0 %v42
    %v357 = vpop.f32.mrb[0].mxu0
    %v358 = vadd.f32 %v287, %v357
    %v359 = vpop.f32.mrb[0].mxu0
    %v360 = vadd.f32 %v289, %v359
    %361 = vdwg.mxu0
    %v362 = vld [vmem:[#allocation2] sm:$0xff]
    %v363 = vld [vmem:[#allocation2 + $0x8] sm:$0xff]
    %v364 = vmul.f32 %v358, %v358
    %v365 = vmul.f32 %v360, %v360
    %v366 = vadd.f32 %v362, %v364
    %v367 = vadd.f32 %v363, %v365
    %368 = vst [vmem:[#allocation2] sm:$0xff] %v366
    %369 = vst [vmem:[#allocation2 + $0x8] sm:$0xff] %v367
    // Predicated region
    $region14: #{vdc_loss_pallas.1} parent=1 // pred_check
      %p370 = pneg %p34
    $region15: #{vdc_loss_pallas.1} parent=1 // pred_check_branch
      %372 = sbr.rel (%p370) target = $region17
    $region16: #{vdc_loss_pallas.1} parent=1 // pred_region
      %v373 = vld [vmem:[#allocation2] sm:$0xff]
      %v374 = vld [vmem:[#allocation2 + $0x8] sm:$0xff]
      %v375 = vadd.f32 %v373, %v374
      %376 = vadd.xlane.f32.xlu0 %v375
      %v377 = vpop.xlane.xlu0 %376
      %v378 = vrot.slane %v377, 4
      %v379 = vadd.f32 %v377, %v378
      %v380 = vrot.slane %v379, 2
      %v381 = vadd.f32 %v379, %v380
      %v382 = vrot.slane %v381, 1
      %v383 = vadd.f32 %v381, %v382
      %s384 = vtos %v383
      %s385 = smul.f32 %s384, 0.00066666666
      %v386 = vstv %s385
      %vm387 = vcmask 0
      %388 = vst.msk [vmem:[#allocation3] sm:$0x1] %vm387, %v386
    $region17: #{vdc_loss_pallas.1} parent=1 // pred_fallthru
      _
    // Predicated region
    $region18: #{vdc_loss_pallas.1} parent=1 // pred_check
      _
    $region19: #{vdc_loss_pallas.1} parent=1 // pred_check_branch
      %390 = sbr.rel (0) target = $region21
    $region20: #{vdc_loss_pallas.1} parent=1 // pred_region
      %s392 = ssub.s32 16, 16
      %393 = vsyncadd [#allocation4], %s392
      %s395 = sshll.u32 [#allocation3], 4
      %s396 = int_to_ptr.vmem [resolvable:$true] %s395
      %398 = dma.vmem_to_hbm [thread:$0]  %s396, 16, %s2, [#allocation4]
    $region21: #{vdc_loss_pallas.1} parent=1 // pred_fallthru
      _
    // Predicated region
    $region22: #{vdc_loss_pallas.1} parent=1 // pred_check
      _
    $region23: #{vdc_loss_pallas.1} parent=1 // pred_check_branch
      %400 = sbr.rel (0) target = $region25
    $region24: #{vdc_loss_pallas.1} parent=1 // pred_region
      %401 = dma.done [#allocation4], 16
    $region25: #{vdc_loss_pallas.1} parent=1 // pred_fallthru
      _
    %402 = vsyncpa [#allocation4], 1

</llo_original>
